<compile_context>
chip_gen: v7x
topology: tpu7x:2x2x1
jax: 0.10.0
libtpu: 0.0.40
codegen_flags: <defaults>
</compile_context>

<pallas_src>
import jax
import jax.numpy as jnp
from jax.experimental import pallas as pl
from jax.experimental.pallas import tpu as pltpu

EPS = 1e-5  # nn.BatchNorm1d default


def _conv1d_valid(x_cl, w_koc):
    """Valid Conv1d for one sample: x_cl (Cin, L), w_koc (K, Cout, Cin) -> (Cout, L1)."""
    K, Cout, _ = w_koc.shape
    L = x_cl.shape[-1]
    L1 = L - K + 1
    acc = jnp.zeros((Cout, L1), jnp.float32)
    for k in range(K):  # K is tiny & static -> unrolled; each step is one MXU matmul
        acc = acc + jnp.dot(w_koc[k], x_cl[:, k:k + L1],
                            preferred_element_type=jnp.float32)
    return acc


def _stats_kernel(x_ref, w_ref, stats_ref):
    # x_ref:     (1, Cin, L)   one sample (NCL, L on lanes)
    # w_ref:     (K, Cout, Cin)
    # stats_ref: (1, Cout, 2)  per-sample [mean, M2] slot (combined in the wrapper)
    x = x_ref[0].astype(jnp.float32)
    w = w_ref[...].astype(jnp.float32)
    z = _conv1d_valid(x, w)                                   # (Cout, L1)
    l1 = jnp.float32(z.shape[-1])
    mean = jnp.sum(z, axis=1, keepdims=True) / l1             # (Cout, 1)
    d = z - mean                                              # exact two-pass within tile
    m2 = jnp.sum(d * d, axis=1, keepdims=True)                # (Cout, 1)
    stats_ref[0] = jnp.concatenate([mean, m2], axis=1)        # (Cout, 2)


def _apply_kernel(x_ref, w_ref, scale_ref, shift_ref, sel_ref, out_ref):
    # x_ref:     (1, Cin, L)
    # w_ref:     (K, Cout, Cin)
    # scale_ref: (Cout, 1)   gamma / sqrt(var + eps)
    # shift_ref: (Cout, 1)   beta - mean * scale
    # sel_ref:   (Lpad-1, Lout) precomputed 0/1 stride-2 compaction matrix
    # out_ref:   (1, Cout, Lout)
    _, Cin, L = x_ref.shape
    K, Cout, _ = w_ref.shape
    L1 = L - K + 1
    Lpad = L1 + (K - 1)

    x = x_ref[0].astype(jnp.float32)
    w = w_ref[...].astype(jnp.float32)

    z = _conv1d_valid(x, w)                                   # (Cout, L1), conv recomputed
    z = z * scale_ref[...] + shift_ref[...]                   # BN affine (mean folded in)
    y = z * jax.nn.sigmoid(z)                                 # Swish (EUP exp path, f32)

    # F.pad(y, (K-1, 0)) along length, kept on lanes.
    ypad = jnp.concatenate([jnp.zeros((Cout, K - 1), jnp.float32), y], axis=1)  # (Cout, Lpad)

    # MaxPool1d(2, stride 2): adjacent-pair max (shifted lane views, one VALU max),
    # then a single stride-2 compaction matmul against the precomputed 0/1 matrix.
    m = jnp.maximum(ypad[:, :Lpad - 1], ypad[:, 1:])          # m[:, l] = max(ypad[l], ypad[l+1])
    pooled = jax.lax.dot_general(m, sel_ref[...], (((1,), (0,)), ((), ())),
                                 preferred_element_type=jnp.float32)  # (Cout, Lout)

    out_ref[0] = pooled.astype(out_ref.dtype)


def conv_norm_pool(x_ncl, w_oik, gamma, beta):
    """x_ncl: (N, Cin, L) f32, w_oik: (Cout, Cin, K). Returns (N, Cout, Lout) f32."""
    N, Cin, L = x_ncl.shape
    Cout, _, K = w_oik.shape
    L1 = L - K + 1
    Lpad = L1 + (K - 1)               # == L
    Lout = Lpad // 2

    x = x_ncl.astype(jnp.float32)
    # Parameter plumbing only (tiny tensors): (K, Cout, Cin) so w[k] is a clean lead index.
    wk = jnp.transpose(w_oik.astype(jnp.float32), (2, 0, 1))

    cparams = pltpu.CompilerParams(
        dimension_semantics=("parallel",),          # independent per-sample grid steps
        vmem_limit_bytes=32 * 1024 * 1024,          # explicit; re-derive per chip at scale
    )

    # ---- pass 1: per-sample partial BatchNorm statistics --------------------
    stats = pl.pallas_call(
        _stats_kernel,
        out_shape=jax.ShapeDtypeStruct((N, Cout, 2), jnp.float32),
        grid=(N,),
        in_specs=[
            pl.BlockSpec((1, Cin, L), lambda n: (n, 0, 0)),
            pl.BlockSpec((K, Cout, Cin), lambda n: (0, 0, 0)),
        ],
        out_specs=pl.BlockSpec((1, Cout, 2), lambda n: (n, 0, 0)),
        compiler_params=cparams,
    )(x, wk)

    # Combine per-sample (mean, M2) with Chan's formula (plain JAX on tiny arrays).
    mean_n = stats[:, :, 0]                                   # (N, Cout)
    m2_n = stats[:, :, 1]                                     # (N, Cout)
    mean = jnp.mean(mean_n, axis=0)                           # (Cout,)
    m2 = jnp.sum(m2_n, axis=0) + jnp.float32(L1) * jnp.sum((mean_n - mean) ** 2, axis=0)
    var = m2 / jnp.float32(N * L1)                            # biased, as BN training uses
    scale = (gamma.astype(jnp.float32) * jax.lax.rsqrt(var + EPS)).reshape(Cout, 1)
    shift = beta.astype(jnp.float32).reshape(Cout, 1) - mean.reshape(Cout, 1) * scale

    # Precomputed stride-2 compaction matrix: column i selects padded position 2*i.
    sel = (jnp.arange(Lpad - 1)[:, None] == 2 * jnp.arange(Lout)[None, :]).astype(jnp.float32)

    # ---- pass 2: recompute conv, BN-affine + Swish + pad + pool --------------
    out = pl.pallas_call(
        _apply_kernel,
        out_shape=jax.ShapeDtypeStruct((N, Cout, Lout), jnp.float32),
        grid=(N,),
        in_specs=[
            pl.BlockSpec((1, Cin, L), lambda n: (n, 0, 0)),
            pl.BlockSpec((K, Cout, Cin), lambda n: (0, 0, 0)),
            pl.BlockSpec((Cout, 1), lambda n: (0, 0)),
            pl.BlockSpec((Cout, 1), lambda n: (0, 0)),
            pl.BlockSpec((Lpad - 1, Lout), lambda n: (0, 0)),
        ],
        out_specs=pl.BlockSpec((1, Cout, Lout), lambda n: (n, 0, 0)),
        compiler_params=cparams,
    )(x, wk, scale, shift, sel)

    return out                                                # (N, Cout, Lout), NCL layout


def _reference(x_ncl, w_oik, gamma, beta, K):
    """Pure-JAX reference mirroring the PyTorch forward (for correctness check)."""
    N, Cin, L = x_ncl.shape
    Cout = w_oik.shape[0]
    L1 = L - K + 1
    conv = jnp.zeros((N, Cout, L1), jnp.float32)
    for k in range(K):
        conv = conv + jnp.einsum('oi,nil->nol', w_oik[:, :, k], x_ncl[:, :, k:k + L1])
    mean = conv.mean(axis=(0, 2), keepdims=True)
    var = ((conv - mean) ** 2).mean(axis=(0, 2), keepdims=True)
    z = (conv - mean) / jnp.sqrt(var + EPS) * gamma.reshape(1, -1, 1) + beta.reshape(1, -1, 1)
    y = z * jax.nn.sigmoid(z)
    ypad = jnp.pad(y, ((0, 0), (0, 0), (K - 1, 0)))
    Lout = ypad.shape[-1] // 2
    return jnp.max(ypad[:, :, :2 * Lout].reshape(N, Cout, Lout, 2), axis=-1)


if __name__ == "__main__":
    # Module hyper-params implied by __init__: input_size=4, hidden_size=8, kernel_size=3
    N, Cin, L = 2, 4, 16
    hidden, K = 8, 3

    key = jax.random.PRNGKey(0)
    k_x, k_w = jax.random.split(key)
    x = jax.random.normal(k_x, (N, Cin, L), jnp.float32)

    # Conv1d weight (Cout, Cin, K), kaiming-uniform-style init (no bias).
    bound = 1.0 / (Cin * K) ** 0.5
    w = jax.random.uniform(k_w, (hidden, Cin, K), jnp.float32, -bound, bound)
    # BatchNorm1d affine params at PyTorch init: gamma=1, beta=0.
    gamma = jnp.ones((hidden,), jnp.float32)
    beta = jnp.zeros((hidden,), jnp.float32)

    out = conv_norm_pool(x, w, gamma, beta)
    out = jax.block_until_ready(out)

    ref = _reference(x, w, gamma, beta, K)
    assert out.shape == (N, hidden, (L - K + 1 + K - 1) // 2), out.shape
    max_err = float(jnp.max(jnp.abs(out - ref)))
    assert max_err < 2e-4, f"mismatch vs reference: {max_err}"

    print("KERNEL_OK")
</pallas_src>

<mosaic_0001>
module attributes {stable_mosaic.version = 11 : i64} {
  func.func @_stats_kernel(%arg0: i32, %arg1: memref<1x4x16xf32, #tpu.memory_space<vmem>>, %arg2: memref<3x8x4xf32, #tpu.memory_space<vmem>>, %arg3: memref<1x8x2xf32, #tpu.memory_space<vmem>>) attributes {dimension_semantics = [#tpu.dimension_semantics<parallel>], iteration_bounds = array<i64: 2>, scalar_prefetch = 0 : i64, scratch_operands = 0 : i64, tpu.core_type = #tpu.core_type<tc>, window_params = [{transform_indices = @transform_0, window_bounds = array<i64: 1, 4, 16>}, {pipeline_mode = #tpu.pipeline_mode<synchronous>, transform_indices = @transform_1, window_bounds = array<i64: 3, 8, 4>}, {transform_indices = @transform_2, window_bounds = array<i64: 1, 8, 2>}]} {
    %c0 = arith.constant 0 : index
    %c0_0 = arith.constant 0 : index
    %c0_1 = arith.constant 0 : index
    %0 = vector.load %arg1[%c0, %c0_0, %c0_1] : memref<1x4x16xf32, #tpu.memory_space<vmem>>, vector<1x4x16xf32>
    %1 = vector.shape_cast %0 : vector<1x4x16xf32> to vector<4x16xf32>
    %c0_2 = arith.constant 0 : index
    %c0_3 = arith.constant 0 : index
    %c0_4 = arith.constant 0 : index
    %2 = vector.load %arg2[%c0_2, %c0_3, %c0_4] : memref<3x8x4xf32, #tpu.memory_space<vmem>>, vector<3x8x4xf32>
    %cst = arith.constant 0.000000e+00 : f32
    %3 = vector.broadcast %cst : f32 to vector<8x14xf32>
    %4 = vector.extract_strided_slice %2 {offsets = [0, 0, 0], sizes = [1, 8, 4], strides = [1, 1, 1]} : vector<3x8x4xf32> to vector<1x8x4xf32>
    %5 = vector.shape_cast %4 : vector<1x8x4xf32> to vector<8x4xf32>
    %6 = vector.extract_strided_slice %1 {offsets = [0, 0], sizes = [4, 14], strides = [1, 1]} : vector<4x16xf32> to vector<4x14xf32>
    %cst_5 = arith.constant dense<0.000000e+00> : vector<8x14xf32>
    %7 = tpu.matmul %5, %6, %cst_5 {dimension_numbers = #tpu.dot_dimension_numbers<[1], [0], [0], [1], [0, 0, 1, 1], [], []>} : vector<8x4xf32>, vector<4x14xf32>, vector<8x14xf32> -> vector<8x14xf32>
    %8 = arith.addf %3, %7 : vector<8x14xf32>
    %9 = vector.extract_strided_slice %2 {offsets = [1, 0, 0], sizes = [1, 8, 4], strides = [1, 1, 1]} : vector<3x8x4xf32> to vector<1x8x4xf32>
    %10 = vector.shape_cast %9 : vector<1x8x4xf32> to vector<8x4xf32>
    %11 = vector.extract_strided_slice %1 {offsets = [0, 1], sizes = [4, 14], strides = [1, 1]} : vector<4x16xf32> to vector<4x14xf32>
    %cst_6 = arith.constant dense<0.000000e+00> : vector<8x14xf32>
    %12 = tpu.matmul %10, %11, %cst_6 {dimension_numbers = #tpu.dot_dimension_numbers<[1], [0], [0], [1], [0, 0, 1, 1], [], []>} : vector<8x4xf32>, vector<4x14xf32>, vector<8x14xf32> -> vector<8x14xf32>
    %13 = arith.addf %8, %12 : vector<8x14xf32>
    %14 = vector.extract_strided_slice %2 {offsets = [2, 0, 0], sizes = [1, 8, 4], strides = [1, 1, 1]} : vector<3x8x4xf32> to vector<1x8x4xf32>
    %15 = vector.shape_cast %14 : vector<1x8x4xf32> to vector<8x4xf32>
    %16 = vector.extract_strided_slice %1 {offsets = [0, 2], sizes = [4, 14], strides = [1, 1]} : vector<4x16xf32> to vector<4x14xf32>
    %cst_7 = arith.constant dense<0.000000e+00> : vector<8x14xf32>
    %17 = tpu.matmul %15, %16, %cst_7 {dimension_numbers = #tpu.dot_dimension_numbers<[1], [0], [0], [1], [0, 0, 1, 1], [], []>} : vector<8x4xf32>, vector<4x14xf32>, vector<8x14xf32> -> vector<8x14xf32>
    %18 = arith.addf %13, %17 : vector<8x14xf32>
    %cst_8 = arith.constant dense<0.000000e+00> : vector<8xf32>
    %19 = vector.multi_reduction <add>, %18, %cst_8 [1] : vector<8x14xf32> to vector<8xf32>
    %20 = vector.shape_cast %19 : vector<8xf32> to vector<8x1xf32>
    %cst_9 = arith.constant 1.400000e+01 : f32
    %21 = vector.broadcast %cst_9 : f32 to vector<8x1xf32>
    %22 = arith.divf %20, %21 : vector<8x1xf32>
    %23 = vector.broadcast %22 : vector<8x1xf32> to vector<8x14xf32>
    %24 = arith.subf %18, %23 : vector<8x14xf32>
    %25 = arith.mulf %24, %24 : vector<8x14xf32>
    %cst_10 = arith.constant dense<0.000000e+00> : vector<8xf32>
    %26 = vector.multi_reduction <add>, %25, %cst_10 [1] : vector<8x14xf32> to vector<8xf32>
    %27 = vector.shape_cast %26 : vector<8xf32> to vector<8x1xf32>
    %28 = tpu.concatenate %22, %27 in 1 : vector<8x1xf32>, vector<8x1xf32> -> vector<8x2xf32>
    %c0_11 = arith.constant 0 : index
    %c0_12 = arith.constant 0 : index
    %c0_13 = arith.constant 0 : index
    %29 = vector.load %arg3[%c0_11, %c0_12, %c0_13] : memref<1x8x2xf32, #tpu.memory_space<vmem>>, vector<1x8x2xf32>
    %30 = vector.shape_cast %29 : vector<1x8x2xf32> to vector<8x2xf32>
    %31 = vector.shape_cast %28 : vector<8x2xf32> to vector<1x8x2xf32>
    tpu.vector_store %arg3[%c0_11, %c0_12, %c0_13], %31 {strides = array<i32>} : memref<1x8x2xf32, #tpu.memory_space<vmem>>, vector<1x8x2xf32>,
    return
  }
  func.func @transform_0(%arg0: i32) -> (i32, i32, i32) {
    %c0_i32 = arith.constant 0 : i32
    %c0_i32_0 = arith.constant 0 : i32
    %c0_i32_1 = arith.constant 0 : i32
    return %arg0, %c0_i32, %c0_i32_0 : i32, i32, i32
  }
  func.func @transform_1(%arg0: i32) -> (i32, i32, i32) {
    %c0_i32 = arith.constant 0 : i32
    %c0_i32_0 = arith.constant 0 : i32
    %c0_i32_1 = arith.constant 0 : i32
    %c0_i32_2 = arith.constant 0 : i32
    return %c0_i32, %c0_i32_0, %c0_i32_1 : i32, i32, i32
  }
  func.func @transform_2(%arg0: i32) -> (i32, i32, i32) {
    %c0_i32 = arith.constant 0 : i32
    %c0_i32_0 = arith.constant 0 : i32
    %c0_i32_1 = arith.constant 0 : i32
    return %arg0, %c0_i32, %c0_i32_0 : i32, i32, i32
  }
}

</mosaic_0001>

<llo_original>
// kernel: tpu_custom_call.1
$region0: #{tpu_custom_call.1}
  #allocation0 [shape = 'u32[]', space=smem, size = 0x4, offset = 0x4, fixed_abs, tag = 'smem constant byte address 0x4 - core index']
  #allocation1 [shape = 'u32[144,128]{1,0:T(1,128)}', space=vmem, size = 0x12000, scoped, tag = 'internal scratch']
  %s0 = inlined_call_operand.vmem [shape: f32[2,4,16], index: 0, kind: input, shape index: {}]
  %s1 = inlined_call_operand.vmem [shape: f32[3,8,4], index: 1, kind: input, shape index: {}]
  %s2 = inlined_call_operand.vmem [shape: f32[2,8,2], index: 2, kind: output, shape index: {}]
  %s3 = sld [smem:[#allocation0]]
  $region41: #{tpu_custom_call.1} parent=0
    _
  %s5 = ssub.s32 1, %s3
  %s6 = scalar_select 0, %s5, %s3
  loop: start=0, step=1, limit=4
  $region2: #{tpu_custom_call.1} parent=0 // loop_pre_header
    _
  $region3: #{tpu_custom_call.1} parent=0 // loop_header
    %s8 = sphi 0, %s12
    %p9 = scmp.ge.s32.totalorder %s8, 4
    %s18 = sphi 0, %s20
    %s21 = sphi 0, %s18
    %s22 = sphi 0, %s21
    %s38 = sphi 0, %s22
    %s42 = sphi 0, %s42
    %s44 = sphi 0, %s42
    %s45 = sphi 0, %s44
    %s59 = sphi 0, %s45
    %s65 = sphi 0, %s67
    %s68 = sphi 0, %s65
    %s69 = sphi 0, %s68
    %s85 = sphi 0, %s69
  $region4: #{tpu_custom_call.1} parent=0 // loop_header_branch
    %11 = sbr.rel (%p9) target = $region8
  $region5: #{tpu_custom_call.1} parent=0 // loop_body
    %s13 = ssub.s32 %s8, 1
    %s14 = ssub.s32 %s8, 2
    %s15 = sadd.s32 %s8, 1
    %s16 = ssub.s32 %s8, %s15
    %p17 = scmp.eq.s32.totalorder %s16, 0
    %s19 = sadd.s32 %s18, 1
    %s20 = scalar_select %p17, %s18, %s19
    %p23 = pneg %p17
    %p24 = scmp.eq.s32.totalorder %s8, 1
    %p25 = por %p23, %p24
    %p26 = scmp.ne.s32.totalorder %s18, %s21
    %p27 = scmp.eq.s32.totalorder %s8, 0
    %p28 = por %p26, %p27
    %p29 = scmp.ne.s32.totalorder %s18, %s21
    %p30 = scmp.eq.s32.totalorder %s13, 1
    %p31 = por %p29, %p30
    %p32 = scmp.ne.s32.totalorder %s21, %s22
    %p33 = scmp.eq.s32.totalorder %s13, 0
    %p34 = por %p32, %p33
    %p35 = scmp.ne.s32.totalorder %s21, %s22
    %p36 = scmp.eq.s32.totalorder %s14, 1
    %p37 = por %p35, %p36
    %p39 = scmp.ne.s32.totalorder %s22, %s38
    %p40 = scmp.eq.s32.totalorder %s14, 0
    %p41 = por %p39, %p40
    %s43 = sadd.s32 %s42, 1
    %p46 = scmp.eq.s32.totalorder %s8, 1
    %p47 = scmp.ne.s32.totalorder %s42, %s44
    %p48 = scmp.eq.s32.totalorder %s8, 0
    %p49 = por %p47, %p48
    %p50 = scmp.ne.s32.totalorder %s42, %s44
    %p51 = scmp.eq.s32.totalorder %s13, 1
    %p52 = por %p50, %p51
    %p53 = scmp.ne.s32.totalorder %s44, %s45
    %p54 = scmp.eq.s32.totalorder %s13, 0
    %p55 = por %p53, %p54
    %p56 = scmp.ne.s32.totalorder %s44, %s45
    %p57 = scmp.eq.s32.totalorder %s14, 1
    %p58 = por %p56, %p57
    %p60 = scmp.ne.s32.totalorder %s45, %s59
    %p61 = scmp.eq.s32.totalorder %s14, 0
    %p62 = por %p60, %p61
    %s63 = ssub.s32 %s8, %s15
    %p64 = scmp.eq.s32.totalorder %s63, 0
    %s66 = sadd.s32 %s65, 1
    %s67 = scalar_select %p64, %s65, %s66
    %p70 = pneg %p64
    %p71 = scmp.eq.s32.totalorder %s8, 1
    %p72 = por %p70, %p71
    %p73 = scmp.ne.s32.totalorder %s65, %s68
    %p74 = scmp.eq.s32.totalorder %s8, 0
    %p75 = por %p73, %p74
    %p76 = scmp.ne.s32.totalorder %s65, %s68
    %p77 = scmp.eq.s32.totalorder %s13, 1
    %p78 = por %p76, %p77
    %p79 = scmp.ne.s32.totalorder %s68, %s69
    %p80 = scmp.eq.s32.totalorder %s13, 0
    %p81 = por %p79, %p80
    %p82 = scmp.ne.s32.totalorder %s68, %s69
    %p83 = scmp.eq.s32.totalorder %s14, 1
    %p84 = por %p82, %p83
    %p86 = scmp.ne.s32.totalorder %s69, %s85
    %p87 = scmp.eq.s32.totalorder %s14, 0
    %p88 = por %p86, %p87
    %p89 = scmp.le.s32.totalorder 1, %s8
    %p90 = scmp.lt.s32.totalorder %s8, 3
    %p91 = pnand %p89, %p90
    %p92 = pneg %p91
    // Predicated region
    $region9: #{tpu_custom_call.1} parent=5 // pred_check
      _
    $region10: #{tpu_custom_call.1} parent=5 // pred_check_branch
      %94 = sbr.rel (%p91) target = $region12
    $region11: #{tpu_custom_call.1} parent=5 // pred_region
      %s95 = ssub.s32 %s8, 1
      // Predicated region
      $region13: #{tpu_custom_call.1} parent=11 // pred_check
        %p96 = pneg %p55
      $region14: #{tpu_custom_call.1} parent=11 // pred_check_branch
        %98 = sbr.rel (%p96) target = $region16
      $region15: #{tpu_custom_call.1} parent=11 // pred_region
        _
      $region16: #{tpu_custom_call.1} parent=11 // pred_fallthru
        _
    $region12: #{tpu_custom_call.1} parent=5 // pred_fallthru
      _
    %p99 = scmp.lt.s32.totalorder %s8, 2
    // Predicated region
    $region17: #{tpu_custom_call.1} parent=5 // pred_check
      %p100 = pneg %p99
    $region18: #{tpu_custom_call.1} parent=5 // pred_check_branch
      %102 = sbr.rel (%p100) target = $region20
    $region19: #{tpu_custom_call.1} parent=5 // pred_region
      // Predicated region
      $region21: #{tpu_custom_call.1} parent=19 // pred_check
        %p103 = pneg %p28
      $region22: #{tpu_custom_call.1} parent=19 // pred_check_branch
        %105 = sbr.rel (%p103) target = $region24
      $region23: #{tpu_custom_call.1} parent=19 // pred_region
        %p106 = scmp.lt.s32.totalorder %s8, 1
        %s107 = scalar_select %p106, %s8, 1
        %s108 = smul.addr %s107, 4
        %s109 = scalar_lea.vmem %s0, %s108
      $region24: #{tpu_custom_call.1} parent=19 // pred_fallthru
        _
    $region20: #{tpu_custom_call.1} parent=5 // pred_fallthru
      _
    %p110 = scmp.le.s32.totalorder 1, %s8
    %p111 = scmp.lt.s32.totalorder %s8, 3
    %p112 = pnand %p110, %p111
    %p113 = pneg %p112
    // Predicated region
    $region25: #{tpu_custom_call.1} parent=5 // pred_check
      _
    $region26: #{tpu_custom_call.1} parent=5 // pred_check_branch
      %115 = sbr.rel (%p112) target = $region28
    $region27: #{tpu_custom_call.1} parent=5 // pred_region
      %s116 = ssub.s32 %s8, 1
      %p117 = scmp.lt.s32.totalorder %s13, 1
      %s118 = scalar_select %p117, %s13, 1
      %s119 = smul.addr %s118, 4
      %s120 = scalar_lea.vmem %s0, %s119
      %p121 = pneg %p34
      %p122 = pneg %p31
      %p123 = pneg %p55
      %p124 = pneg %p52
      %p125 = pneg %p81
      %p126 = pneg %p78
      %p127 = scmp.lt.s32.totalorder %s13, 1
      %s128 = scalar_select %p127, %s13, 1
      %s129 = smul.addr %s128, 8
      %s130 = scalar_lea.vmem %s2, %s129
      %p131 = scmp.lt.s32.totalorder %s13, 1
      %s132 = scalar_select %p131, %s13, 1
      %s133 = smul.addr %s132, 4
      %s134 = scalar_lea.vmem %s0, %s133
      %p135 = scmp.lt.s32.totalorder %s13, 1
      %s136 = scalar_select %p135, %s13, 1
      %s137 = smul.addr %s136, 8
      %s138 = scalar_lea.vmem %s2, %s137
      %v139 = vld [vmem:[%s134] sm:$0xf]
      %v140 = vld [vmem:[%s1] sm:$0xff]
      %v141 = vld [vmem:[%s1 + $0x8] sm:$0xff]
      %v142 = vld [vmem:[%s1 + $0x10] sm:$0xff]
      %144 = vrot.lane.b32.xlu0 %v139, 127
      %v145 = vpop.permute.xlu0 %144
      %vm146 = vcmask 31744
      %v148 = vsel %vm146, %v141, 0
      %vm150 = vcmask 1043456
      %v151 = vsel %vm150, %v145, 0
      %153 = vmatprep.subr.mxu0 0.0
      %154 = vmatpush1.msra.mxu0 %v151
      %155 = vmatprep.subr.mxu0 0.0
      %156 = vmatpush1.msra.mxu0 0.0
      %157 = vmatprep.subr.mxu0 0.0
      %158 = vmatpush1.msra.mxu0 0.0
      %159 = vmatprep.subr.mxu0 0.0
      %160 = vmatpush1.msra.mxu0 0.0
      %161 = vmatprep.subr.mxu0 0.0
      %162 = vmatpush1.msra.mxu0 0.0
      %163 = vmatprep.subr.mxu0 0.0
      %164 = vmatpush1.msra.mxu0 0.0
      %165 = vmatprep.subr.mxu0 0.0
      %166 = vmatpush1.msra.mxu0 0.0
      %167 = vmatprep.subr.mxu0 0.0
      %168 = vmatpush1.msra.mxu0 0.0
      %169 = vmatprep.subr.mxu0 0.0
      %170 = vmatpush1.msra.mxu0 0.0
      %171 = vmatprep.subr.mxu0 0.0
      %172 = vmatpush1.msra.mxu0 0.0
      %173 = vmatprep.subr.mxu0 0.0
      %174 = vmatpush1.msra.mxu0 0.0
      %175 = vmatprep.subr.mxu0 0.0
      %176 = vmatpush1.msra.mxu0 0.0
      %177 = vmatprep.subr.mxu0 0.0
      %178 = vmatpush1.msra.mxu0 0.0
      %179 = vmatprep.subr.mxu0 0.0
      %180 = vmatpush1.msra.mxu0 0.0
      %181 = vmatprep.subr.mxu0 0.0
      %182 = vmatpush1.msra.mxu0 0.0
      %183 = vmatprep.subr.mxu0 0.0
      %184 = vmatpush1.msra.mxu0 0.0
      %185 = vmatprep.subr.mxu0 0.0
      %186 = vmatpush1.msra.mxu0 0.0
      %187 = vmatprep.subr.mxu0 0.0
      %188 = vmatpush1.msra.mxu0 0.0
      %189 = vmatprep.subr.mxu0 0.0
      %190 = vmatpush1.msra.mxu0 0.0
      %191 = vmatprep.subr.mxu0 0.0
      %192 = vmatpush1.msra.mxu0 0.0
      %193 = vmatprep.subr.mxu0 0.0
      %194 = vmatpush1.msra.mxu0 0.0
      %195 = vmatprep.subr.mxu0 0.0
      %196 = vmatpush1.msra.mxu0 0.0
      %197 = vmatprep.subr.mxu0 0.0
      %198 = vmatpush1.msra.mxu0 0.0
      %199 = vmatprep.subr.mxu0 0.0
      %200 = vmatpush1.msra.mxu0 0.0
      %201 = vmatprep.subr.mxu0 0.0
      %202 = vmatpush1.msra.mxu0 0.0
      %203 = vmatprep.subr.mxu0 0.0
      %204 = vmatpush1.msra.mxu0 0.0
      %205 = vmatprep.subr.mxu0 0.0
      %206 = vmatpush1.msra.mxu0 0.0
      %207 = vmatprep.subr.mxu0 0.0
      %208 = vmatpush1.msra.mxu0 0.0
      %209 = vmatprep.subr.mxu0 0.0
      %210 = vmatpush1.msra.mxu0 0.0
      %211 = vmatprep.subr.mxu0 0.0
      %212 = vmatpush1.msra.mxu0 0.0
      %213 = vmatprep.subr.mxu0 0.0
      %214 = vmatpush1.msra.mxu0 0.0
      %215 = vmatprep.subr.mxu0 0.0
      %216 = vmatpush1.msra.mxu0 0.0
      %217 = vmatprep.mubr.f32.mxu0 0.0
      %218 = vmatmul.mubr.f32.gmra.mrb[0].mxu0 %v148
      %v219 = vpop.f32.mrb[0].mxu0
      %v220 = vadd.f32 0.0, %v219
      %v221 = vpop.f32.mrb[0].mxu0
      %222 = vdwg.mxu0
      %v224 = vsel %vm146, %v140, 0
      %v226 = vsel %vm150, %v139, 0
      %228 = vmatprep.subr.mxu0 0.0
      %229 = vmatpush1.msra.mxu0 %v226
      %230 = vmatprep.subr.mxu0 0.0
      %231 = vmatpush1.msra.mxu0 0.0
      %232 = vmatprep.subr.mxu0 0.0
      %233 = vmatpush1.msra.mxu0 0.0
      %234 = vmatprep.subr.mxu0 0.0
      %235 = vmatpush1.msra.mxu0 0.0
      %236 = vmatprep.subr.mxu0 0.0
      %237 = vmatpush1.msra.mxu0 0.0
      %238 = vmatprep.subr.mxu0 0.0
      %239 = vmatpush1.msra.mxu0 0.0
      %240 = vmatprep.subr.mxu0 0.0
      %241 = vmatpush1.msra.mxu0 0.0
      %242 = vmatprep.subr.mxu0 0.0
      %243 = vmatpush1.msra.mxu0 0.0
      %244 = vmatprep.subr.mxu0 0.0
      %245 = vmatpush1.msra.mxu0 0.0
      %246 = vmatprep.subr.mxu0 0.0
      %247 = vmatpush1.msra.mxu0 0.0
      %248 = vmatprep.subr.mxu0 0.0
      %249 = vmatpush1.msra.mxu0 0.0
      %250 = vmatprep.subr.mxu0 0.0
      %251 = vmatpush1.msra.mxu0 0.0
      %252 = vmatprep.subr.mxu0 0.0
      %253 = vmatpush1.msra.mxu0 0.0
      %254 = vmatprep.subr.mxu0 0.0
      %255 = vmatpush1.msra.mxu0 0.0
      %256 = vmatprep.subr.mxu0 0.0
      %257 = vmatpush1.msra.mxu0 0.0
      %258 = vmatprep.subr.mxu0 0.0
      %259 = vmatpush1.msra.mxu0 0.0
      %260 = vmatprep.subr.mxu0 0.0
      %261 = vmatpush1.msra.mxu0 0.0
      %262 = vmatprep.subr.mxu0 0.0
      %263 = vmatpush1.msra.mxu0 0.0
      %264 = vmatprep.subr.mxu0 0.0
      %265 = vmatpush1.msra.mxu0 0.0
      %266 = vmatprep.subr.mxu0 0.0
      %267 = vmatpush1.msra.mxu0 0.0
      %268 = vmatprep.subr.mxu0 0.0
      %269 = vmatpush1.msra.mxu0 0.0
      %270 = vmatprep.subr.mxu0 0.0
      %271 = vmatpush1.msra.mxu0 0.0
      %272 = vmatprep.subr.mxu0 0.0
      %273 = vmatpush1.msra.mxu0 0.0
      %274 = vmatprep.subr.mxu0 0.0
      %275 = vmatpush1.msra.mxu0 0.0
      %276 = vmatprep.subr.mxu0 0.0
      %277 = vmatpush1.msra.mxu0 0.0
      %278 = vmatprep.subr.mxu0 0.0
      %279 = vmatpush1.msra.mxu0 0.0
      %280 = vmatprep.subr.mxu0 0.0
      %281 = vmatpush1.msra.mxu0 0.0
      %282 = vmatprep.subr.mxu0 0.0
      %283 = vmatpush1.msra.mxu0 0.0
      %284 = vmatprep.subr.mxu0 0.0
      %285 = vmatpush1.msra.mxu0 0.0
      %286 = vmatprep.subr.mxu0 0.0
      %287 = vmatpush1.msra.mxu0 0.0
      %288 = vmatprep.subr.mxu0 0.0
      %289 = vmatpush1.msra.mxu0 0.0
      %290 = vmatprep.subr.mxu0 0.0
      %291 = vmatpush1.msra.mxu0 0.0
      %292 = vmatprep.mubr.f32.mxu0 0.0
      %293 = vmatmul.mubr.f32.gmra.mrb[0].mxu0 %v224
      %v294 = vpop.f32.mrb[0].mxu0
      %v295 = vadd.f32 %v220, %v294
      %v296 = vpop.f32.mrb[0].mxu0
      %297 = vdwg.mxu0
      %298 = vrot.lane.b32.xlu0 %v139, 126
      %v299 = vpop.permute.xlu0 %298
      %v301 = vsel %vm146, %v142, 0
      %v303 = vsel %vm150, %v299, 0
      %305 = vmatprep.subr.mxu0 0.0
      %306 = vmatpush1.msra.mxu0 %v303
      %307 = vmatprep.subr.mxu0 0.0
      %308 = vmatpush1.msra.mxu0 0.0
      %309 = vmatprep.subr.mxu0 0.0
      %310 = vmatpush1.msra.mxu0 0.0
      %311 = vmatprep.subr.mxu0 0.0
      %312 = vmatpush1.msra.mxu0 0.0
      %313 = vmatprep.subr.mxu0 0.0
      %314 = vmatpush1.msra.mxu0 0.0
      %315 = vmatprep.subr.mxu0 0.0
      %316 = vmatpush1.msra.mxu0 0.0
      %317 = vmatprep.subr.mxu0 0.0
      %318 = vmatpush1.msra.mxu0 0.0
      %319 = vmatprep.subr.mxu0 0.0
      %320 = vmatpush1.msra.mxu0 0.0
      %321 = vmatprep.subr.mxu0 0.0
      %322 = vmatpush1.msra.mxu0 0.0
      %323 = vmatprep.subr.mxu0 0.0
      %324 = vmatpush1.msra.mxu0 0.0
      %325 = vmatprep.subr.mxu0 0.0
      %326 = vmatpush1.msra.mxu0 0.0
      %327 = vmatprep.subr.mxu0 0.0
      %328 = vmatpush1.msra.mxu0 0.0
      %329 = vmatprep.subr.mxu0 0.0
      %330 = vmatpush1.msra.mxu0 0.0
      %331 = vmatprep.subr.mxu0 0.0
      %332 = vmatpush1.msra.mxu0 0.0
      %333 = vmatprep.subr.mxu0 0.0
      %334 = vmatpush1.msra.mxu0 0.0
      %335 = vmatprep.subr.mxu0 0.0
      %336 = vmatpush1.msra.mxu0 0.0
      %337 = vmatprep.subr.mxu0 0.0
      %338 = vmatpush1.msra.mxu0 0.0
      %339 = vmatprep.subr.mxu0 0.0
      %340 = vmatpush1.msra.mxu0 0.0
      %341 = vmatprep.subr.mxu0 0.0
      %342 = vmatpush1.msra.mxu0 0.0
      %343 = vmatprep.subr.mxu0 0.0
      %344 = vmatpush1.msra.mxu0 0.0
      %345 = vmatprep.subr.mxu0 0.0
      %346 = vmatpush1.msra.mxu0 0.0
      %347 = vmatprep.subr.mxu0 0.0
      %348 = vmatpush1.msra.mxu0 0.0
      %349 = vmatprep.subr.mxu0 0.0
      %350 = vmatpush1.msra.mxu0 0.0
      %351 = vmatprep.subr.mxu0 0.0
      %352 = vmatpush1.msra.mxu0 0.0
      %353 = vmatprep.subr.mxu0 0.0
      %354 = vmatpush1.msra.mxu0 0.0
      %355 = vmatprep.subr.mxu0 0.0
      %356 = vmatpush1.msra.mxu0 0.0
      %357 = vmatprep.subr.mxu0 0.0
      %358 = vmatpush1.msra.mxu0 0.0
      %359 = vmatprep.subr.mxu0 0.0
      %360 = vmatpush1.msra.mxu0 0.0
      %361 = vmatprep.subr.mxu0 0.0
      %362 = vmatpush1.msra.mxu0 0.0
      %363 = vmatprep.subr.mxu0 0.0
      %364 = vmatpush1.msra.mxu0 0.0
      %365 = vmatprep.subr.mxu0 0.0
      %366 = vmatpush1.msra.mxu0 0.0
      %367 = vmatprep.subr.mxu0 0.0
      %368 = vmatpush1.msra.mxu0 0.0
      %369 = vmatprep.mubr.f32.mxu0 0.0
      %370 = vmatmul.mubr.f32.gmra.mrb[0].mxu0 %v301
      %v371 = vpop.f32.mrb[0].mxu0
      %v372 = vadd.f32 0.0, %v371
      %v373 = vpop.f32.mrb[0].mxu0
      %374 = vdwg.mxu0
      %v375 = vadd.f32 %v295, %v372
      %vm376 = vcmask 113664
      %v377 = vsel %vm376, %v375, 0.0
      %378 = vadd.xlane.f32.xlu0 %v377
      %v379 = vpop.xlane.xlu0 %378
      %v380 = vrcp.pop 14.0
      %v381 = vmul.f32 %v379, %v380
      %v382 = vsub.f32 %v375, %v381
      %v383 = vmul.f32 %v382, %v382
      %v384 = vsel %vm376, %v383, 0.0
      %385 = vadd.xlane.f32.xlu0 %v384
      %v386 = vpop.xlane.xlu0 %385
      %vm387 = vcmask 7168
      %v388 = vsel %vm387, %v381, %v386
      %vm389 = vcmask 15360
      %390 = vst.msk [vmem:[%s138] sm:$0xff] %vm389, %v388
      %p391 = scmp.lt.s32.totalorder %s13, 1
      %s392 = scalar_select %p391, %s13, 1
      %s393 = smul.addr %s392, 8
      %s394 = scalar_lea.vmem %s2, %s393
      // Predicated region
      $region29: #{tpu_custom_call.1} parent=27 // pred_check
        %p395 = pneg %p78
      $region30: #{tpu_custom_call.1} parent=27 // pred_check_branch
        %397 = sbr.rel (%p395) target = $region32
      $region31: #{tpu_custom_call.1} parent=27 // pred_region
        _
      $region32: #{tpu_custom_call.1} parent=27 // pred_fallthru
        _
    $region28: #{tpu_custom_call.1} parent=5 // pred_fallthru
      _
    %p398 = scmp.le.s32.totalorder 2, %s8
    // Predicated region
    $region33: #{tpu_custom_call.1} parent=5 // pred_check
      %p399 = pneg %p398
    $region34: #{tpu_custom_call.1} parent=5 // pred_check_branch
      %401 = sbr.rel (%p399) target = $region36
    $region35: #{tpu_custom_call.1} parent=5 // pred_region
      %s402 = ssub.s32 %s8, 2
      // Predicated region
      $region37: #{tpu_custom_call.1} parent=35 // pred_check
        %p403 = pneg %p84
      $region38: #{tpu_custom_call.1} parent=35 // pred_check_branch
        %405 = sbr.rel (%p403) target = $region40
      $region39: #{tpu_custom_call.1} parent=35 // pred_region
        %p406 = scmp.lt.s32.totalorder %s14, 1
        %s407 = scalar_select %p406, %s14, 1
        %s408 = smul.addr %s407, 8
        %s409 = scalar_lea.vmem %s2, %s408
      $region40: #{tpu_custom_call.1} parent=35 // pred_fallthru
        _
    $region36: #{tpu_custom_call.1} parent=5 // pred_fallthru
      _
  $region6: #{tpu_custom_call.1} parent=0 // loop_footer
    %s12 = sadd.s32 1, %s8
  $region7: #{tpu_custom_call.1} parent=0 // loop_footer_branch
    %7 = sbr.rel target = $region3
  $region8: #{tpu_custom_call.1} parent=0 // loop_exit
    _

</llo_original>
